<compile_context>
chip_gen: v6e
topology: v6e:2x2x1
jax: 0.10.0
libtpu: 0.0.40
codegen_flags: <defaults>
</compile_context>

<pallas_src>
import functools

import jax
import jax.numpy as jnp
import numpy as np
from jax import lax
from jax.experimental import pallas as pl
from jax.experimental.pallas import tpu as pltpu


# --------------------------------------------------------------------------
# Helpers
# --------------------------------------------------------------------------
@functools.lru_cache(maxsize=None)
def _vmem_limit_bytes():
    """Explicit scoped-VMEM ceiling (perf review): ~3/4 of physical VMEM,
    capped at 100 MiB (v5e/v6e: 128 MiB physical, v7x: 64 MiB)."""
    cap = 128 * 1024 * 1024
    try:
        cap = int(pltpu.get_tpu_info().vmem_capacity_bytes)
    except Exception:
        pass
    return int(min(cap * 3 // 4, 100 * 1024 * 1024))


# --------------------------------------------------------------------------
# Tiled projection GEMM (PyTorch nn.Linear(bias=False), weight in [out, in])
# --------------------------------------------------------------------------
def _linear_kernel(x_ref, w_ref, o_ref, acc_ref):
    # x: [tm, tk], w: [tn, tk]  ->  o: [tm, tn]  (contract the 'in' dims).
    @pl.when(pl.program_id(2) == 0)
    def _():
        acc_ref[...] = jnp.zeros_like(acc_ref)

    # bf16 MXU operands, f32 accumulation (perf review).
    acc_ref[...] += lax.dot_general(
        x_ref[...].astype(jnp.bfloat16), w_ref[...].astype(jnp.bfloat16),
        dimension_numbers=(((1,), (1,)), ((), ())),
        preferred_element_type=jnp.float32)

    @pl.when(pl.program_id(2) == pl.num_programs(2) - 1)
    def _():
        o_ref[...] = acc_ref[...].astype(o_ref.dtype)


def _pick_tile(dim, cap, align):
    """Largest tile <= cap that divides dim and is a multiple of `align`;
    falls back to the full extent (always layout-legal)."""
    if dim <= cap:
        return dim
    best = None
    for t in range(align, cap + 1, align):
        if dim % t == 0:
            best = t
    return best if best is not None else dim


def linear(x2d, w, *, out_dtype=jnp.float32, tm_cap=256, tn_cap=512, tk_cap=512):
    """y = x @ w.T with w: [out, in] -- no wrapper-side weight transpose."""
    M, K = x2d.shape
    N = w.shape[0]
    tm = _pick_tile(M, tm_cap, 8)
    tn = _pick_tile(N, tn_cap, 128)
    tk = _pick_tile(K, tk_cap, 128)
    grid = (M // tm, N // tn, K // tk)
    bytes_accessed = (x2d.dtype.itemsize * M * K + w.dtype.itemsize * N * K
                      + np.dtype(out_dtype).itemsize * M * N)
    cost = pl.CostEstimate(flops=2 * M * N * K, transcendentals=0,
                           bytes_accessed=int(bytes_accessed))
    return pl.pallas_call(
        _linear_kernel,
        out_shape=jax.ShapeDtypeStruct((M, N), out_dtype),
        grid=grid,
        in_specs=[
            pl.BlockSpec((tm, tk), lambda i, j, k: (i, k)),
            pl.BlockSpec((tn, tk), lambda i, j, k: (j, k)),
        ],
        out_specs=pl.BlockSpec((tm, tn), lambda i, j, k: (i, j)),
        scratch_shapes=[pltpu.VMEM((tm, tn), jnp.float32)],
        compiler_params=pltpu.CompilerParams(
            dimension_semantics=("parallel", "parallel", "arbitrary"),
            vmem_limit_bytes=_vmem_limit_bytes()),
        cost_estimate=cost,
    )(x2d, w)


# --------------------------------------------------------------------------
# Exact Transformer-XL relative shift of a [Q, K] tile
# --------------------------------------------------------------------------
@functools.lru_cache(maxsize=None)
def _roll_rel_shift_ok(q_len, k_len):
    """Probe the pltpu.roll forms used by the fast rel-shift path at the exact
    [Q, K] tile shape.  True iff they lower and match the jnp.roll convention
    assumed by _rel_shift_roll; otherwise the exact unrolled fallback is used."""
    if q_len < 1 or q_len > k_len:
        return False
    s1 = (k_len - q_len + 1) % k_len
    s2 = (q_len - 1) % q_len
    try:
        x = jnp.arange(q_len * k_len, dtype=jnp.float32).reshape(q_len, k_len)

        def probe(x_ref, a_ref, b_ref, c_ref):
            v = x_ref[...]
            a_ref[...] = pltpu.roll(v, shift=s1, axis=1)
            b_ref[...] = pltpu.roll(v, shift=0, axis=1, stride=1, stride_axis=0)
            c_ref[...] = pltpu.roll(v, shift=s2, axis=0)

        shp = jax.ShapeDtypeStruct((q_len, k_len), jnp.float32)
        a, b, c = jax.block_until_ready(
            pl.pallas_call(probe, out_shape=(shp, shp, shp))(x))
        exp_a = jnp.roll(x, s1, axis=1)
        exp_b = jnp.stack([jnp.roll(x[i], i, axis=0) for i in range(q_len)])
        exp_c = jnp.roll(x, s2, axis=0)
        return (bool(jnp.array_equal(a, exp_a))
                and bool(jnp.array_equal(b, exp_b))
                and bool(jnp.array_equal(c, exp_c)))
    except Exception:
        return False


def _rel_shift_roll(sp, q_len, k_len):
    """Exact _rel_shift of a [Q, K] tile using XLU rotations (O(Q*K)).

    Row q of the output is row q of sp rotated left by (Q-1-q); the positions
    that run past the end read the inserted zero column and then the start of
    row q+1 -- bit-exact replica of the module's pad/flatten/reshape trick.
    """
    # per-row right-rotate by q, then one static rotate => left-rotate by Q-1-q
    r1 = pltpu.roll(sp, shift=0, axis=1, stride=1, stride_axis=0)
    main = pltpu.roll(r1, shift=(k_len - q_len + 1) % k_len, axis=1)
    # same pipeline on the "next row" view (one extra static rotate) -> wrap part
    nxt = pltpu.roll(sp, shift=(q_len - 1) % q_len, axis=0)       # nxt[q] = sp[q+1]
    r2 = pltpu.roll(nxt, shift=0, axis=1, stride=1, stride_axis=0)
    wrap = pltpu.roll(r2, shift=(k_len - q_len + 2) % k_len, axis=1)

    row = lax.broadcasted_iota(jnp.int32, (q_len, k_len), 0)
    col = lax.broadcasted_iota(jnp.int32, (q_len, k_len), 1)
    t = col + (q_len - 1) - row            # source index within the padded row
    zero = jnp.zeros_like(sp)
    return jnp.where(t < k_len, main, jnp.where(t == k_len, zero, wrap))


def _rel_shift_unrolled(sp, q_len, k_len):
    """Exact fallback path (same math, O(Q^2*K) VALU work)."""
    zero_col = jnp.zeros((q_len, 1), sp.dtype)
    nxt = jnp.concatenate([sp[1:, :], jnp.zeros((1, k_len), sp.dtype)], axis=0)
    w = jnp.concatenate([sp, zero_col, nxt], axis=1)              # [Q, 2K+1]
    row = lax.broadcasted_iota(jnp.int32, (q_len, k_len), 0)
    out = jnp.zeros((q_len, k_len), sp.dtype)
    for r in range(q_len):
        s = q_len - 1 - r
        out = out + jnp.where(row == r, w[:, s:s + k_len], 0.0)
    return out


# --------------------------------------------------------------------------
# Fused attention kernel: scores + rel_shift + softmax + A@V (per batch/head)
# --------------------------------------------------------------------------
def _attn_kernel(q_ref, k_ref, v_ref, p_ref, u_ref, vb_ref, ctx_ref,
                 *maybe_att_ref, scale, q_len, k_len, use_roll, with_att):
    f32 = jnp.float32
    bf16 = jnp.bfloat16

    q = q_ref[...].astype(f32)                                    # [Q, D]
    qu = ((q + u_ref[...].astype(f32)) * scale).astype(bf16)      # fold softmax scale
    qv = ((q + vb_ref[...].astype(f32)) * scale).astype(bf16)
    k = k_ref[...].astype(bf16)                                   # [K, D]
    p = p_ref[...].astype(bf16)                                   # [K, D]

    dn = (((1,), (1,)), ((), ()))                                 # contract head_dim
    sc = lax.dot_general(qu, k, dn, preferred_element_type=f32)   # content logits
    sp = lax.dot_general(qv, p, dn, preferred_element_type=f32)   # position logits

    if use_roll:
        rel = _rel_shift_roll(sp, q_len, k_len)
    else:
        rel = _rel_shift_unrolled(sp, q_len, k_len)
    s = sc + rel                                                  # already scaled

    # softmax over the key axis (all vector math in f32, EUP reciprocal)
    m = jnp.max(s, axis=-1, keepdims=True)
    e = jnp.exp(s - m)
    a = e * pl.reciprocal(jnp.sum(e, axis=-1, keepdims=True), approx=True)

    if with_att:
        maybe_att_ref[0][...] = a.astype(maybe_att_ref[0].dtype)  # bf16 writeback

    ctx = jnp.dot(a.astype(bf16), v_ref[...].astype(bf16),
                  preferred_element_type=f32)                     # [Q, D]
    ctx_ref[...] = ctx.astype(ctx_ref.dtype)


# --------------------------------------------------------------------------
# Forward pass
# --------------------------------------------------------------------------
def mha_forward(emb_new, emb_old, emb_pos, u_, v_, weights,
                num_heads, head_dim, mask=None, return_att=False):
    if mask is not None:
        # TODO(synk): masked_fill path not implemented (module default is None).
        raise NotImplementedError("mask is not supported by this Pallas port")
    # TODO(synk): dropout is identity (eval mode / p=0) in this port.

    Wq, Wkv, Wp, Wfc = weights
    q_len, B, E = emb_new.shape
    H, D = num_heads, head_dim
    scale = 1.0 / float(head_dim) ** 5            # reproduce the module exactly

    emb = jnp.concatenate([emb_old, emb_new], axis=0)             # [K, B, E]
    k_len = emb.shape[0]

    # Projection GEMMs (tiled Pallas GEMMs, PyTorch weight layout).  Outputs
    # are emitted in bf16 to halve the DMA bytes into the attention kernel.
    q = linear(emb_new.reshape(q_len * B, E), Wq, out_dtype=jnp.bfloat16)
    kv = linear(emb.reshape(k_len * B, E), Wkv, out_dtype=jnp.bfloat16)
    p = linear(emb_pos, Wp, out_dtype=jnp.bfloat16)

    # Regroup to per-(batch, head) tiles with (seq, head_dim) on (sublane, lane).
    # TODO(synk): fold these transposes into the projection out_specs /
    #             attention in_specs (strided DMA) once size-1 second-minor
    #             BlockSpec dims are verified on all target generations.
    kv = jnp.transpose(kv.reshape(k_len, B, 2, H, D), (2, 1, 3, 0, 4))  # [2,B,H,K,D]
    kb, vv = kv[0], kv[1]
    qb = jnp.transpose(q.reshape(q_len, B, H, D), (1, 2, 0, 3))   # [B,H,Q,D]
    pb = jnp.transpose(p.reshape(k_len, H, D), (1, 0, 2))         # [H,K,D]
    u3 = u_.reshape(H, 1, D).astype(jnp.float32)
    v3 = v_.reshape(H, 1, D).astype(jnp.float32)

    use_roll = _roll_rel_shift_ok(q_len, k_len)

    im_bh = lambda b, h: (b, h, 0, 0)
    im_h = lambda b, h: (h, 0, 0)

    out_shapes = [jax.ShapeDtypeStruct((B, H, q_len, D), jnp.bfloat16)]
    out_specs = [pl.BlockSpec((None, None, q_len, D), im_bh)]
    if return_att:
        out_shapes.append(jax.ShapeDtypeStruct((B, H, q_len, k_len), jnp.bfloat16))
        out_specs.append(pl.BlockSpec((None, None, q_len, k_len), im_bh))

    cost = pl.CostEstimate(
        flops=6 * B * H * q_len * k_len * D,
        transcendentals=B * H * q_len * k_len,
        bytes_accessed=int(2 * (3 * B * H * q_len * D + 2 * B * H * k_len * D
                                + H * k_len * D
                                + (B * H * q_len * k_len if return_att else 0))
                           + 8 * H * D))

    def run_attn(use_roll_flag):
        return pl.pallas_call(
            functools.partial(_attn_kernel, scale=scale, q_len=q_len,
                              k_len=k_len, use_roll=use_roll_flag,
                              with_att=return_att),
            out_shape=tuple(out_shapes) if return_att else out_shapes[0],
            grid=(B, H),
            in_specs=[
                pl.BlockSpec((None, None, q_len, D), im_bh),   # q
                pl.BlockSpec((None, None, k_len, D), im_bh),   # k
                pl.BlockSpec((None, None, k_len, D), im_bh),   # v
                pl.BlockSpec((None, k_len, D), im_h),          # p (batch-invariant)
                pl.BlockSpec((None, 1, D), im_h),              # u_ bias
                pl.BlockSpec((None, 1, D), im_h),              # v_ bias
            ],
            out_specs=tuple(out_specs) if return_att else out_specs[0],
            compiler_params=pltpu.CompilerParams(
                dimension_semantics=("parallel", "parallel"),
                vmem_limit_bytes=_vmem_limit_bytes()),
            cost_estimate=cost,
        )(qb, kb, vv, pb, u3, v3)

    # TODO(synk): for long contexts, stream K as an extra 'arbitrary' grid axis
    #             with an online-softmax accumulator (and tile Q) so the live
    #             [Q,K] intermediates fit v7x's 64 MiB VMEM.
    try:
        res = run_attn(use_roll)
    except Exception:
        if not use_roll:
            raise
        res = run_attn(False)

    if return_att:
        ctx, att = res
    else:
        ctx, att = res, None

    # Output projection: ONE tiled GEMM contracting the full H*D dimension
    # (fills the 256-deep MXU on v6e/v7x; Wfc is not re-DMA'd per (b, h)).
    ctx2d = jnp.transpose(ctx, (2, 0, 1, 3)).reshape(q_len * B, H * D)
    out = linear(ctx2d, Wfc, out_dtype=jnp.float32).reshape(q_len, B, E)

    if return_att:
        # Match the module's [q, i, b, h] attention layout (debug path only).
        att = jnp.transpose(att, (2, 3, 0, 1))
    return out, att


# --------------------------------------------------------------------------
# Pure-JAX reference (mirrors the PyTorch forward exactly) for verification
# --------------------------------------------------------------------------
def _rel_shift_ref(x):
    zero_pad = jnp.zeros_like(x[:, 0:1])
    y = jnp.concatenate([zero_pad, x], axis=1)
    y = y.reshape(x.shape[1] + 1, x.shape[0], *x.shape[2:])[1:]
    return y.reshape(x.shape)


def ref_forward(emb_new, emb_old, emb_pos, u_, v_, weights, num_heads, head_dim):
    Wq, Wkv, Wp, Wfc = weights
    scale = 1.0 / float(head_dim) ** 5
    q_len, B, _ = emb_new.shape
    with jax.default_matmul_precision("highest"):
        emb = jnp.concatenate([emb_old, emb_new], axis=0)
        kv = emb @ Wkv.T
        k, v = jnp.split(kv, 2, axis=-1)
        k = k.reshape(-1, B, num_heads, head_dim)
        v = v.reshape(k.shape)
        q = (emb_new @ Wq.T).reshape(-1, B, num_heads, head_dim)
        p = (emb_pos @ Wp.T).reshape(-1, num_heads, head_dim)
        ac = jnp.einsum('qbhd,ibhd->qibh', q + u_, k)
        ap = _rel_shift_ref(jnp.einsum('qbhd,ihd->qibh', q + v_, p))
        att = jax.nn.softmax((ac + ap) * scale, axis=1)
        out = jnp.einsum('qibh,ibhd->qbhd', att, v).reshape(
            q_len, B, num_heads * head_dim)
        return out @ Wfc.T, att


# --------------------------------------------------------------------------
if __name__ == "__main__":
    emb_dim, head_dim, num_heads = 32, 8, 4
    q_len, mem_len, batch = 8, 8, 2
    k_len = q_len + mem_len

    keys = jax.random.split(jax.random.PRNGKey(0), 9)

    def init_linear(k, out_f, in_f):
        bound = 1.0 / float(np.sqrt(in_f))
        return jax.random.uniform(k, (out_f, in_f), jnp.float32, -bound, bound)

    Wq = init_linear(keys[0], head_dim * num_heads, emb_dim)
    Wkv = init_linear(keys[1], head_dim * num_heads * 2, emb_dim)
    Wp = init_linear(keys[2], head_dim * num_heads, emb_dim)
    Wfc = init_linear(keys[3], emb_dim, head_dim * num_heads)
    weights = (Wq, Wkv, Wp, Wfc)

    # Inputs scaled up so that logits * (1/head_dim**5) (the module's unusual
    # scale, reproduced exactly) give a non-trivial softmax.
    emb_new = 150.0 * jax.random.normal(keys[4], (q_len, batch, emb_dim), jnp.float32)
    emb_old = 150.0 * jax.random.normal(keys[5], (mem_len, batch, emb_dim), jnp.float32)
    emb_pos = 150.0 * jax.random.normal(keys[6], (k_len, emb_dim), jnp.float32)
    u_ = 50.0 * jax.random.normal(keys[7], (num_heads, head_dim), jnp.float32)
    v_ = 50.0 * jax.random.normal(keys[8], (num_heads, head_dim), jnp.float32)

    out, att = mha_forward(emb_new, emb_old, emb_pos, u_, v_, weights,
                           num_heads, head_dim, return_att=True)
    out = jax.block_until_ready(out)
    att = jax.block_until_ready(att)

    out_noatt, att_none = mha_forward(emb_new, emb_old, emb_pos, u_, v_, weights,
                                      num_heads, head_dim, return_att=False)
    out_noatt = jax.block_until_ready(out_noatt)
    assert att_none is None

    ref_out, ref_att = ref_forward(emb_new, emb_old, emb_pos, u_, v_, weights,
                                   num_heads, head_dim)

    # Tolerances: the kernel deliberately uses bf16 MXU operands with f32
    # accumulation (perf review), while the reference runs at 'highest' f32
    # matmul precision; the 150x input scaling makes intermediates O(100), so
    # the output tolerance is expressed relative to the output dynamic range.
    att_np = np.asarray(att.astype(jnp.float32))
    out_np = np.asarray(out)
    out_noatt_np = np.asarray(out_noatt)
    ref_att_np = np.asarray(ref_att)
    ref_out_np = np.asarray(ref_out)

    out_atol = 0.08 * float(np.max(np.abs(ref_out_np)))
    np.testing.assert_allclose(att_np, ref_att_np, rtol=4e-2, atol=4e-2)
    np.testing.assert_allclose(out_np, ref_out_np, rtol=5e-2, atol=out_atol)
    np.testing.assert_allclose(out_noatt_np, ref_out_np, rtol=5e-2, atol=out_atol)
    print("KERNEL_OK")
</pallas_src>

<mosaic_0001>
module attributes {stable_mosaic.version = 11 : i64} {
  func.func @_linear_kernel(%arg0: i32, %arg1: i32, %arg2: i32, %arg3: memref<16x32xf32, #tpu.memory_space<vmem>>, %arg4: memref<32x32xf32, #tpu.memory_space<vmem>>, %arg5: memref<16x32xbf16, #tpu.memory_space<vmem>>, %arg6: memref<16x32xf32, #tpu.memory_space<vmem>>) attributes {dimension_semantics = [#tpu.dimension_semantics<parallel>, #tpu.dimension_semantics<parallel>, #tpu.dimension_semantics<arbitrary>], iteration_bounds = array<i64: 1, 1, 1>, scalar_prefetch = 0 : i64, scratch_operands = 1 : i64, tpu.core_type = #tpu.core_type<tc>, window_params = [{transform_indices = @transform_0, window_bounds = array<i64: 16, 32>}, {transform_indices = @transform_1, window_bounds = array<i64: 32, 32>}, {transform_indices = @transform_2, window_bounds = array<i64: 16, 32>}]} {
    %c0_i32 = arith.constant 0 : i32
    %0 = arith.cmpi eq, %arg2, %c0_i32 : i32
    %1 = arith.extui %0 : i1 to i32
    %c0_i32_0 = arith.constant 0 : i32
    %2 = arith.cmpi ne, %1, %c0_i32_0 : i32
    scf.if %2 {
      %cst_10 = arith.constant 0.000000e+00 : f32
      %14 = vector.broadcast %cst_10 : f32 to vector<16x32xf32>
      %c0_11 = arith.constant 0 : index
      %c0_12 = arith.constant 0 : index
      %15 = vector.load %arg6[%c0_11, %c0_12] : memref<16x32xf32, #tpu.memory_space<vmem>>, vector<16x32xf32>
      tpu.vector_store %arg6[%c0_11, %c0_12], %14 {strides = array<i32>} : memref<16x32xf32, #tpu.memory_space<vmem>>, vector<16x32xf32>,
    } else {
    }
    %c0 = arith.constant 0 : index
    %c0_1 = arith.constant 0 : index
    %3 = vector.load %arg6[%c0, %c0_1] : memref<16x32xf32, #tpu.memory_space<vmem>>, vector<16x32xf32>
    %c0_2 = arith.constant 0 : index
    %c0_3 = arith.constant 0 : index
    %4 = vector.load %arg3[%c0_2, %c0_3] : memref<16x32xf32, #tpu.memory_space<vmem>>, vector<16x32xf32>
    %5 = arith.truncf %4 : vector<16x32xf32> to vector<16x32xbf16>
    %c0_4 = arith.constant 0 : index
    %c0_5 = arith.constant 0 : index
    %6 = vector.load %arg4[%c0_4, %c0_5] : memref<32x32xf32, #tpu.memory_space<vmem>>, vector<32x32xf32>
    %7 = arith.truncf %6 : vector<32x32xf32> to vector<32x32xbf16>
    %cst = arith.constant dense<0.000000e+00> : vector<16x32xf32>
    %8 = tpu.matmul %5, %7, %cst {dimension_numbers = #tpu.dot_dimension_numbers<[1], [1], [0], [0], [0, 0, 1, 0], [], []>} : vector<16x32xbf16>, vector<32x32xbf16>, vector<16x32xf32> -> vector<16x32xf32>
    %9 = arith.addf %3, %8 : vector<16x32xf32>
    %c0_6 = arith.constant 0 : index
    %c0_7 = arith.constant 0 : index
    %10 = vector.load %arg6[%c0_6, %c0_7] : memref<16x32xf32, #tpu.memory_space<vmem>>, vector<16x32xf32>
    tpu.vector_store %arg6[%c0_6, %c0_7], %9 {strides = array<i32>} : memref<16x32xf32, #tpu.memory_space<vmem>>, vector<16x32xf32>,
    %c0_i32_8 = arith.constant 0 : i32
    %11 = arith.cmpi eq, %arg2, %c0_i32_8 : i32
    %12 = arith.extui %11 : i1 to i32
    %c0_i32_9 = arith.constant 0 : i32
    %13 = arith.cmpi ne, %12, %c0_i32_9 : i32
    scf.if %13 {
      %c0_10 = arith.constant 0 : index
      %c0_11 = arith.constant 0 : index
      %14 = vector.load %arg6[%c0_10, %c0_11] : memref<16x32xf32, #tpu.memory_space<vmem>>, vector<16x32xf32>
      %15 = arith.truncf %14 : vector<16x32xf32> to vector<16x32xbf16>
      %c0_12 = arith.constant 0 : index
      %c0_13 = arith.constant 0 : index
      %16 = vector.load %arg5[%c0_12, %c0_13] : memref<16x32xbf16, #tpu.memory_space<vmem>>, vector<16x32xbf16>
      tpu.vector_store %arg5[%c0_12, %c0_13], %15 {strides = array<i32>} : memref<16x32xbf16, #tpu.memory_space<vmem>>, vector<16x32xbf16>,
    } else {
    }
    return
  }
  func.func @transform_0(%arg0: i32, %arg1: i32, %arg2: i32) -> (i32, i32) {
    %c0_i32 = arith.constant 0 : i32
    return %arg0, %arg2 : i32, i32
  }
  func.func @transform_1(%arg0: i32, %arg1: i32, %arg2: i32) -> (i32, i32) {
    %c0_i32 = arith.constant 0 : i32
    return %arg1, %arg2 : i32, i32
  }
  func.func @transform_2(%arg0: i32, %arg1: i32, %arg2: i32) -> (i32, i32) {
    %c0_i32 = arith.constant 0 : i32
    return %arg0, %arg1 : i32, i32
  }
}

</mosaic_0001>

<llo_original>
// kernel: tpu_custom_call.1
$region0: #{tpu_custom_call.1}
  #allocation0 [shape = 'u32[]', space=smem, size = 0x4, offset = 0x4, fixed_abs, tag = 'smem constant byte address 0x4 - core index']
  #allocation1 [shape = 'u32[144,128]{1,0:T(1,128)}', space=vmem, size = 0x12000, scoped, tag = 'internal scratch']
  #allocation2 [shape = 'f32[16,32]{1,0:T(8,128)}', space=vmem, size = 0x2000, scoped, tag = 'scratch operand']
  %s0 = inlined_call_operand.hbm [shape: f32[16,32], index: 0, kind: input, shape index: {}]
  %s1 = inlined_call_operand.hbm [shape: f32[32,32], index: 1, kind: input, shape index: {}]
  %s2 = inlined_call_operand.hbm [shape: bf16[16,32], index: 2, kind: output, shape index: {}]
  %s3 = sld [smem:[#allocation0]]
  $region34: #{tpu_custom_call.1} parent=0
    _
  %s5 = ssub.s32 1, %s3
  %s6 = scalar_select 0, %s5, %s3
  $region1: #{tpu_custom_call.1} parent=0
    #allocation3 [shape = 'u8[8192]{0}', space=vmem, size = 0x2000, scoped, tag = 'input window, operand 0, single buffered']
    #allocation4 [shape = 's32[1]{0}', space=sflag, size = 0x4, scoped, tag = 'scoped memory for tpu_custom_call.1']
    #allocation5 [shape = 's32[1]{0}', space=sflag, size = 0x4, scoped, tag = 'scoped memory for tpu_custom_call.1']
    #allocation6 [shape = 'u8[16384]{0}', space=vmem, size = 0x4000, scoped, tag = 'input window, operand 1, single buffered']
    #allocation7 [shape = 's32[1]{0}', space=sflag, size = 0x4, scoped, tag = 'scoped memory for tpu_custom_call.1']
    #allocation8 [shape = 'u8[4096]{0}', space=vmem, size = 0x1000, scoped, tag = 'output window, operand 0, single buffered']
    %7 = vsyncpa [#allocation4], 0
    %8 = vsyncpa [#allocation7], 0
    %9 = vsyncpa [#allocation5], 0
    // Predicated region
    $region2: #{tpu_custom_call.1} parent=1 // pred_check
      _
    $region3: #{tpu_custom_call.1} parent=1 // pred_check_branch
      %11 = sbr.rel (0) target = $region5
    $region4: #{tpu_custom_call.1} parent=1 // pred_region
      %s13 = ssub.s32 256, 256
      %14 = vsyncadd [#allocation4], %s13
      %s15 = sshll.u32 [#allocation3], 4
      %s16 = int_to_ptr.vmem [resolvable:$true] %s15
      %21 = dma.hbm_to_vmem [thread:$0]  %s0, 256, %s16, [#allocation4], 128, 128, 8
    $region5: #{tpu_custom_call.1} parent=1 // pred_fallthru
      _
    // Predicated region
    $region6: #{tpu_custom_call.1} parent=1 // pred_check
      _
    $region7: #{tpu_custom_call.1} parent=1 // pred_check_branch
      %23 = sbr.rel (0) target = $region9
    $region8: #{tpu_custom_call.1} parent=1 // pred_region
      %s25 = ssub.s32 512, 512
      %26 = vsyncadd [#allocation7], %s25
      %s27 = sshll.u32 [#allocation6], 4
      %s28 = int_to_ptr.vmem [resolvable:$true] %s27
      %33 = dma.hbm_to_vmem [thread:$0]  %s1, 512, %s28, [#allocation7], 128, 128, 8
    $region9: #{tpu_custom_call.1} parent=1 // pred_fallthru
      _
    // Predicated region
    $region10: #{tpu_custom_call.1} parent=1 // pred_check
      _
    $region11: #{tpu_custom_call.1} parent=1 // pred_check_branch
      %35 = sbr.rel (0) target = $region13
    $region12: #{tpu_custom_call.1} parent=1 // pred_region
      %36 = dma.done [#allocation4], 256
    $region13: #{tpu_custom_call.1} parent=1 // pred_fallthru
      _
    // Predicated region
    $region14: #{tpu_custom_call.1} parent=1 // pred_check
      _
    $region15: #{tpu_custom_call.1} parent=1 // pred_check_branch
      %38 = sbr.rel (0) target = $region17
    $region16: #{tpu_custom_call.1} parent=1 // pred_region
      %39 = dma.done [#allocation7], 512
    $region17: #{tpu_custom_call.1} parent=1 // pred_fallthru
      _
    %p41 = scmp.eq.s32.totalorder 0, 0
    // Predicated region
    $region18: #{tpu_custom_call.1} parent=1 // pred_check
      %p42 = pneg %p41
    $region19: #{tpu_custom_call.1} parent=1 // pred_check_branch
      %44 = sbr.rel (%p42) target = $region21
    $region20: #{tpu_custom_call.1} parent=1 // pred_region
      %vm45 = vcmask 261120
      %46 = vst.msk [vmem:[#allocation2] sm:$0xff] %vm45, 0.0
      %47 = vst.msk [vmem:[#allocation2 + $0x8] sm:$0xff] %vm45, 0.0
    $region21: #{tpu_custom_call.1} parent=1 // pred_fallthru
      _
    %v48 = vld [vmem:[#allocation2] sm:$0xff]
    %v49 = vld [vmem:[#allocation2 + $0x8] sm:$0xff]
    %v50 = vld [vmem:[#allocation3] sm:$0xff]
    %v51 = vld [vmem:[#allocation3 + $0x8] sm:$0xff]
    %v52 = vpack.c.bf16 %v51, %v50
    %v53 = vld [vmem:[#allocation6] sm:$0xff]
    %v54 = vld [vmem:[#allocation6 + $0x8] sm:$0xff]
    %v55 = vld [vmem:[#allocation6 + $0x10] sm:$0xff]
    %v56 = vld [vmem:[#allocation6 + $0x18] sm:$0xff]
    %v57 = vpack.c.bf16 %v54, %v53
    %v58 = vpack.c.bf16 %v56, %v55
    %vm59 = vcmask 261120
    %v61 = vsel %vm59, %v52, 0
    %v64 = vsel %vm59, %v57, 0
    %v67 = vsel %vm59, %v58, 0
    %69 = vmatprep.subr.bf16.mxu0 0
    %70 = vmatpush1.bf16.xpose.msra.mxu0 0
    %71 = vmatprep.subr.bf16.mxu0 0
    %72 = vmatpush1.bf16.xpose.msra.mxu0 0
    %73 = vmatprep.subr.bf16.mxu0 0
    %74 = vmatpush1.bf16.xpose.msra.mxu0 0
    %75 = vmatprep.subr.bf16.mxu0 0
    %76 = vmatpush1.bf16.xpose.msra.mxu0 0
    %77 = vmatprep.subr.bf16.mxu0 0
    %78 = vmatpush1.bf16.xpose.msra.mxu0 0
    %79 = vmatprep.subr.bf16.mxu0 0
    %80 = vmatpush1.bf16.xpose.msra.mxu0 0
    %81 = vmatprep.subr.bf16.mxu0 0
    %82 = vmatpush1.bf16.xpose.msra.mxu0 %v67
    %83 = vmatprep.subr.bf16.mxu0 0
    %84 = vmatpush1.bf16.xpose.msra.mxu0 %v64
    %85 = vmatprep.subr.bf16.mxu0 0
    %86 = vmatpush2.bf16.xpose.msra.mxu0 0
    %87 = vmatprep.subr.bf16.mxu0 0
    %88 = vmatpush2.bf16.xpose.msra.mxu0 0
    %89 = vmatprep.subr.bf16.mxu0 0
    %90 = vmatpush2.bf16.xpose.msra.mxu0 0
    %91 = vmatprep.subr.bf16.mxu0 0
    %92 = vmatpush2.bf16.xpose.msra.mxu0 0
    %93 = vmatprep.subr.bf16.mxu0 0
    %94 = vmatpush2.bf16.xpose.msra.mxu0 0
    %95 = vmatprep.subr.bf16.mxu0 0
    %96 = vmatpush2.bf16.xpose.msra.mxu0 0
    %97 = vmatprep.subr.bf16.mxu0 0
    %98 = vmatpush2.bf16.xpose.msra.mxu0 0
    %99 = vmatprep.subr.bf16.mxu0 0
    %100 = vmatpush2.bf16.xpose.msra.mxu0 0
    %101 = vmatprep.mubr.bf16.mxu0 0
    %102 = vmatmul.mubr.bf16.gmra.mxu0 %v61
    %v103 = vpop.f32.mrf.mxu0
    %v104 = vadd.f32 0.0, %v103
    %v105 = vpop.f32.mrf.mxu0
    %v106 = vpop.f32.mrf.mxu0
    %v107 = vadd.f32 0.0, %v106
    %v108 = vpop.f32.mrf.mxu0
    %109 = vdwg.mxu0
    %v110 = vadd.f32 %v48, %v104
    %v111 = vadd.f32 %v49, %v107
    %112 = vst.msk [vmem:[#allocation2] sm:$0xff] %vm59, %v110
    %113 = vst.msk [vmem:[#allocation2 + $0x8] sm:$0xff] %vm59, %v111
    // Predicated region
    $region22: #{tpu_custom_call.1} parent=1 // pred_check
      %p114 = pneg %p41
    $region23: #{tpu_custom_call.1} parent=1 // pred_check_branch
      %116 = sbr.rel (%p114) target = $region25
    $region24: #{tpu_custom_call.1} parent=1 // pred_region
      %v117 = vld [vmem:[#allocation2] sm:$0xff]
      %v118 = vld [vmem:[#allocation2 + $0x8] sm:$0xff]
      %v119 = vpack.c.bf16 %v118, %v117
      %v121 = vunpack.c.l.b16 %v119
      %v122 = vunpack.c.h.b16 %v119
      %v123 = vpack.c.b16 %v121, %v121
      %v124 = vpack.c.b16 %v122, %v122
      %vm127 = vcmask 257024
      %128 = vst.msk [vmem:[#allocation8] sm:$0xf] %vm127, %v123
      %129 = vst.msk [vmem:[#allocation8 + $0x4] sm:$0xf] %vm127, %v124
    $region25: #{tpu_custom_call.1} parent=1 // pred_fallthru
      _
    // Predicated region
    $region26: #{tpu_custom_call.1} parent=1 // pred_check
      _
    $region27: #{tpu_custom_call.1} parent=1 // pred_check_branch
      %131 = sbr.rel (0) target = $region29
    $region28: #{tpu_custom_call.1} parent=1 // pred_region
      %s133 = ssub.s32 128, 128
      %134 = vsyncadd [#allocation5], %s133
      %s135 = sshll.u32 [#allocation8], 4
      %s136 = int_to_ptr.vmem [resolvable:$true] %s135
      %141 = dma.vmem_to_hbm [thread:$0]  %s136, 128, %s2, [#allocation5], 64, 64, 4
    $region29: #{tpu_custom_call.1} parent=1 // pred_fallthru
      _
    // Predicated region
    $region30: #{tpu_custom_call.1} parent=1 // pred_check
      _
    $region31: #{tpu_custom_call.1} parent=1 // pred_check_branch
      %143 = sbr.rel (0) target = $region33
    $region32: #{tpu_custom_call.1} parent=1 // pred_region
      %144 = dma.done [#allocation5], 128
    $region33: #{tpu_custom_call.1} parent=1 // pred_fallthru
      _
    %145 = vsyncpa [#allocation4], 1
    %146 = vsyncpa [#allocation7], 1
    %147 = vsyncpa [#allocation5], 1

</llo_original>
